<compile_context>
chip_gen: v7x
topology: tpu7x:2x2x1
jax: 0.10.0
libtpu: 0.0.40
codegen_flags: <defaults>
</compile_context>

<pallas_src>
import functools
import math

import jax
import jax.numpy as jnp
from jax import lax
from jax.experimental import pallas as pl
from jax.experimental.pallas import tpu as pltpu


def _f_score_partial_kernel(x_ref, labels_ref, thr_ref, out_ref, *,
                            total_rows, ragged):
    """Per-block partial sums: out row lanes 0..2 = [tp, retrieved, relevant]."""
    g = pl.program_id(0)
    block_rows, width = x_ref.shape
    zero = jnp.float32(0.0)
    one = jnp.float32(1.0)

    def emit(valid):
        x = x_ref[...]                    # native dtype, no up-cast copy
        labels = labels_ref[...]
        thr = thr_ref[...]                # (1, W) -> broadcasts over rows
        pred = x > thr                    # bool (TN, W); promotion matches torch
        tp_hit = jnp.logical_and(labels == 1, pred)
        labels_f = labels.astype(jnp.float32)
        if valid is not None:             # only on the (possibly ragged) last block
            pred = jnp.logical_and(pred, valid)
            tp_hit = jnp.logical_and(tp_hit, valid)
            labels_f = jnp.where(valid, labels_f, zero)
        tp = jnp.sum(jnp.where(tp_hit, one, zero), keepdims=True)        # (1, 1)
        retrieved = jnp.sum(jnp.where(pred, one, zero), keepdims=True)   # (1, 1)
        relevant = jnp.sum(labels_f, keepdims=True)                      # (1, 1)

        # One lane-dense 128-wide row per block (lanes 0..2 hold the sums).
        lane = lax.broadcasted_iota(jnp.int32, (1, 1, 128), 2)
        out_ref[...] = (jnp.where(lane == 0, tp, zero)
                        + jnp.where(lane == 1, retrieved, zero)
                        + jnp.where(lane == 2, relevant, zero))

    if not ragged:
        # Row count divides the tile: no masking machinery compiled at all.
        emit(None)
    else:
        last = pl.num_programs(0) - 1

        @pl.when(g != last)
        def _():
            emit(None)                    # fast path for all full blocks

        @pl.when(g == last)
        def _():
            rows_left = total_rows - g * block_rows
            row_ids = lax.broadcasted_iota(jnp.int32, (block_rows, width), 0)
            emit(row_ids < rows_left)     # masked path, last block only


def _lane_fill(width):
    if width <= 0:
        return 0.0
    return width / float(-(-width // 128) * 128)


def _pick_row_merge(n, c, lane_budget=4096):
    """Divisor k of n maximizing 128-lane fill of k*c (keep >=8 rows if possible)."""
    if c <= 0 or c >= lane_budget:
        return 1
    max_k = max(1, min(n, lane_budget // c))
    best_key = None
    best_k = 1
    for k in range(1, max_k + 1):
        if n % k:
            continue
        key = (n // k >= 8 or n < 8, _lane_fill(k * c), k)
        if best_key is None or key > best_key:
            best_key = key
            best_k = k
    return best_k


def _vmem_limit_bytes():
    """Per-generation VMEM limit: ~64 MiB on v5e/v6e (128 MiB phys), ~48 MiB on v7x."""
    cap = 128 * 1024 * 1024
    try:
        info = pltpu.get_tpu_info()
        cap = int(getattr(info, "vmem_capacity_bytes", cap))
    except Exception:
        pass
    return int(min(max(cap - 16 * 1024 * 1024, 16 * 1024 * 1024), 64 * 1024 * 1024))


def _pick_block_rows(rows, width, stream_bytes_per_elem, vmem_limit_bytes):
    """Rows per block: multiple of 8, sized from real dtypes and the VMEM budget."""
    per_row_bytes = max(width, 1) * max(stream_bytes_per_elem, 1)
    # Two input streams, each double-buffered: one tile pair targets ~30% of limit.
    tile_budget = max(vmem_limit_bytes * 3 // 10, 1 << 20)
    tn = tile_budget // per_row_bytes
    tn = max(8, (tn // 8) * 8)
    rows_up = ((rows + 7) // 8) * 8
    tn = min(tn, rows_up)
    # Keep >=2 grid steps whenever the data allows so v7x's two TCs both engage.
    if rows > 8:
        half = (((rows + 1) // 2) + 7) // 8 * 8
        tn = min(tn, max(8, half))
    return max(8, tn)


def f_score_pallas(x, labels, thresholds, *, block_rows=None, row_merge=None):
    """x: (N, C), labels: (N, C), thresholds: (C,) -> (f_score, precision, recall)."""
    n, c = x.shape
    assert labels.shape == (n, c)
    thresholds = jnp.asarray(thresholds).reshape(c)

    lane_budget = 4096
    k = _pick_row_merge(n, c, lane_budget) if row_merge is None else int(row_merge)

    # If no divisor of N gives decent lane fill, pad N so k*C is lane-exact.
    # Pad values contribute nothing: x -> -inf (never > threshold), labels -> 0.
    if row_merge is None and _lane_fill(k * c) < 0.75:
        k_pad = 128 // math.gcd(c, 128)
        if 0 < k_pad * c <= lane_budget:
            k_full = k_pad * max(1, (lane_budget // c) // k_pad)
            n_pad = -(-n // k_full) * k_full
            pad = n_pad - n
            if pad > 0:
                if jnp.issubdtype(x.dtype, jnp.floating):
                    pad_x = jnp.full((pad, c), -jnp.inf, x.dtype)
                else:
                    pad_x = jnp.full((pad, c), jnp.iinfo(x.dtype).min, x.dtype)
                x = jnp.concatenate([x, pad_x], axis=0)
                labels = jnp.concatenate(
                    [labels, jnp.zeros((pad, c), labels.dtype)], axis=0)
                n = n_pad
            k = k_full

    assert n % k == 0
    width = k * c
    rows = n // k
    # Zero-copy lane densification: (N, C) -> (N//k, k*C), thresholds tiled k*.
    x2 = x.reshape(rows, width)
    labels2 = labels.reshape(rows, width)
    thr_row = jnp.tile(thresholds, k).reshape(1, width)

    vmem_limit = _vmem_limit_bytes()
    stream_bytes = x2.dtype.itemsize + labels2.dtype.itemsize
    tn = (_pick_block_rows(rows, width, stream_bytes, vmem_limit)
          if block_rows is None else int(block_rows))
    assert tn % 8 == 0 and tn > 0
    num_blocks = -(-rows // tn)
    ragged = (rows % tn) != 0

    cost = pl.CostEstimate(
        flops=8 * rows * width,
        transcendentals=0,
        bytes_accessed=int(x2.size * x2.dtype.itemsize
                           + labels2.size * labels2.dtype.itemsize
                           + thr_row.size * thr_row.dtype.itemsize
                           + num_blocks * 128 * 4),
    )

    kernel = functools.partial(_f_score_partial_kernel,
                               total_rows=rows, ragged=ragged)

    partials = pl.pallas_call(
        kernel,
        out_shape=jax.ShapeDtypeStruct((num_blocks, 1, 128), jnp.float32),
        grid=(num_blocks,),
        in_specs=[
            pl.BlockSpec((tn, width), lambda g: (g, 0)),   # x
            pl.BlockSpec((tn, width), lambda g: (g, 0)),   # labels
            pl.BlockSpec((1, width), lambda g: (0, 0)),    # thresholds row
        ],
        out_specs=pl.BlockSpec((1, 1, 128), lambda g: (g, 0, 0)),
        compiler_params=pltpu.CompilerParams(
            dimension_semantics=("parallel",),             # megacore split on v7x
            vmem_limit_bytes=int(vmem_limit),
        ),
        cost_estimate=cost,
    )(x2, labels2, thr_row)

    # Tiny cross-block combine + the scalar divides in the wrapper.
    tp = jnp.sum(partials[:, 0, 0])
    retrieved = jnp.sum(partials[:, 0, 1])
    relevant = jnp.sum(partials[:, 0, 2])

    eps = jnp.float32(1e-10)
    precision = tp / (retrieved + eps)
    recall = tp / (relevant + eps)
    f_score = jnp.float32(2.0) * (precision * recall) / (precision + recall + eps)
    return f_score, precision, recall


def f_score_ref(x, labels, thresholds):
    """Pure-JAX reference matching the PyTorch forward."""
    x = x.astype(jnp.float32)
    labels = labels.astype(jnp.float32)
    predict = x > thresholds.astype(jnp.float32)[None, :]
    tp = jnp.sum(jnp.logical_and(labels == 1.0, predict).astype(jnp.float32))
    retrieved = jnp.sum(predict.astype(jnp.float32))
    relevant = jnp.sum(labels)
    precision = tp / (retrieved + 1e-10)
    recall = tp / (relevant + 1e-10)
    f = 2 * (precision * recall) / (precision + recall + 1e-10)
    return f, precision, recall


if __name__ == "__main__":
    # Module's default THRESHOLDS has 42 entries => C = 42.
    N, C = 84, 42
    key = jax.random.PRNGKey(0)
    kx, kl = jax.random.split(key)

    x = jax.random.uniform(kx, (N, C), dtype=jnp.float32)                # "probabilities"
    labels = (jax.random.uniform(kl, (N, C)) > 0.5).astype(jnp.float32)  # 0/1 labels
    thresholds = jnp.full((C,), 0.5, dtype=jnp.float32)                  # as in __init__

    # 1) Default auto-tuned path (lane-dense row merge, dtype-aware block rows).
    f, p, r = f_score_pallas(x, labels, thresholds)
    # 2) Forced small blocks: multi-step grid + ragged last block (fast & masked paths).
    f2, p2, r2 = f_score_pallas(x, labels, thresholds, block_rows=8, row_merge=2)
    # 3) N with no good divisor -> wrapper pads rows to a lane-exact width.
    x3, l3 = x[:13], labels[:13]
    f3, p3, r3 = f_score_pallas(x3, l3, thresholds)
    jax.block_until_ready((f, p, r, f2, p2, r2, f3, p3, r3))

    fr, pr, rr = f_score_ref(x, labels, thresholds)
    fr3, pr3, rr3 = f_score_ref(x3, l3, thresholds)
    for got, want in ((f, fr), (p, pr), (r, rr),
                      (f2, fr), (p2, pr), (r2, rr),
                      (f3, fr3), (p3, pr3), (r3, rr3)):
        assert jnp.allclose(got, want, atol=1e-6, rtol=1e-6), (got, want)

    print("KERNEL_OK")
</pallas_src>

<mosaic_0001>
module attributes {stable_mosaic.version = 11 : i64} {
  func.func @_f_score_partial_kernel(%arg0: i32, %arg1: memref<8x252xf32, #tpu.memory_space<vmem>>, %arg2: memref<8x252xf32, #tpu.memory_space<vmem>>, %arg3: memref<1x252xf32, #tpu.memory_space<vmem>>, %arg4: memref<1x1x128xf32, #tpu.memory_space<vmem>>) attributes {dimension_semantics = [#tpu.dimension_semantics<parallel>], iteration_bounds = array<i64: 2>, scalar_prefetch = 0 : i64, scratch_operands = 0 : i64, tpu.core_type = #tpu.core_type<tc>, window_params = [{transform_indices = @transform_0, window_bounds = array<i64: 8, 252>}, {transform_indices = @transform_1, window_bounds = array<i64: 8, 252>}, {pipeline_mode = #tpu.pipeline_mode<synchronous>, transform_indices = @transform_2, window_bounds = array<i64: 1, 252>}, {transform_indices = @transform_3, window_bounds = array<i64: 1, 1, 128>}]} {
    %c1_i32 = arith.constant 1 : i32
    %0 = arith.cmpi ne, %arg0, %c1_i32 : i32
    %1 = arith.extui %0 : i1 to i32
    %cst = arith.constant 1.000000e+00 : f32
    %cst_0 = arith.constant 0.000000e+00 : f32
    %c0_i32 = arith.constant 0 : i32
    %2 = arith.cmpi ne, %1, %c0_i32 : i32
    scf.if %2 {
      %c0 = arith.constant 0 : index
      %c0_5 = arith.constant 0 : index
      %6 = vector.load %arg1[%c0, %c0_5] : memref<8x252xf32, #tpu.memory_space<vmem>>, vector<8x252xf32>
      %c0_6 = arith.constant 0 : index
      %c0_7 = arith.constant 0 : index
      %7 = vector.load %arg2[%c0_6, %c0_7] : memref<8x252xf32, #tpu.memory_space<vmem>>, vector<8x252xf32>
      %c0_8 = arith.constant 0 : index
      %c0_9 = arith.constant 0 : index
      %8 = vector.load %arg3[%c0_8, %c0_9] : memref<1x252xf32, #tpu.memory_space<vmem>>, vector<1x252xf32>
      %9 = vector.broadcast %8 : vector<1x252xf32> to vector<8x252xf32>
      %10 = arith.cmpf ogt, %6, %9 : vector<8x252xf32>
      %cst_10 = arith.constant 1.000000e+00 : f32
      %11 = vector.broadcast %cst_10 : f32 to vector<8x252xf32>
      %12 = arith.cmpf oeq, %7, %11 : vector<8x252xf32>
      %13 = arith.andi %12, %10 : vector<8x252xi1>
      %14 = vector.broadcast %cst : f32 to vector<8x252xf32>
      %15 = vector.broadcast %cst_0 : f32 to vector<8x252xf32>
      %16 = arith.select %13, %14, %15 : vector<8x252xi1>, vector<8x252xf32>
      %17 = vector.shape_cast %16 : vector<8x252xf32> to vector<1x8x252xf32>
      %cst_11 = arith.constant dense<0.000000e+00> : vector<1xf32>
      %18 = vector.multi_reduction <add>, %17, %cst_11 [1, 2] : vector<1x8x252xf32> to vector<1xf32>
      %19 = vector.shape_cast %18 : vector<1xf32> to vector<1x1x1xf32>
      %20 = vector.extract %19[0, 0, 0] : f32 from vector<1x1x1xf32>
      %21 = vector.broadcast %20 : f32 to vector<1x1xf32>
      %22 = vector.broadcast %cst : f32 to vector<8x252xf32>
      %23 = vector.broadcast %cst_0 : f32 to vector<8x252xf32>
      %24 = arith.select %10, %22, %23 : vector<8x252xi1>, vector<8x252xf32>
      %25 = vector.shape_cast %24 : vector<8x252xf32> to vector<1x8x252xf32>
      %cst_12 = arith.constant dense<0.000000e+00> : vector<1xf32>
      %26 = vector.multi_reduction <add>, %25, %cst_12 [1, 2] : vector<1x8x252xf32> to vector<1xf32>
      %27 = vector.shape_cast %26 : vector<1xf32> to vector<1x1x1xf32>
      %28 = vector.extract %27[0, 0, 0] : f32 from vector<1x1x1xf32>
      %29 = vector.broadcast %28 : f32 to vector<1x1xf32>
      %30 = vector.shape_cast %7 : vector<8x252xf32> to vector<1x8x252xf32>
      %cst_13 = arith.constant dense<0.000000e+00> : vector<1xf32>
      %31 = vector.multi_reduction <add>, %30, %cst_13 [1, 2] : vector<1x8x252xf32> to vector<1xf32>
      %32 = vector.shape_cast %31 : vector<1xf32> to vector<1x1x1xf32>
      %33 = vector.extract %32[0, 0, 0] : f32 from vector<1x1x1xf32>
      %34 = vector.broadcast %33 : f32 to vector<1x1xf32>
      %35 = tpu.iota {dimensions = array<i32: 2>} : vector<1x1x128xi32>
      %c0_i32_14 = arith.constant 0 : i32
      %36 = vector.broadcast %c0_i32_14 : i32 to vector<1x1x128xi32>
      %37 = arith.cmpi eq, %35, %36 : vector<1x1x128xi32>
      %38 = vector.shape_cast %21 : vector<1x1xf32> to vector<1x1x1xf32>
      %39 = vector.broadcast %38 : vector<1x1x1xf32> to vector<1x1x128xf32>
      %40 = vector.broadcast %cst_0 : f32 to vector<1x1x128xf32>
      %41 = arith.select %37, %39, %40 : vector<1x1x128xi1>, vector<1x1x128xf32>
      %c1_i32_15 = arith.constant 1 : i32
      %42 = vector.broadcast %c1_i32_15 : i32 to vector<1x1x128xi32>
      %43 = arith.cmpi eq, %35, %42 : vector<1x1x128xi32>
      %44 = vector.shape_cast %29 : vector<1x1xf32> to vector<1x1x1xf32>
      %45 = vector.broadcast %44 : vector<1x1x1xf32> to vector<1x1x128xf32>
      %46 = vector.broadcast %cst_0 : f32 to vector<1x1x128xf32>
      %47 = arith.select %43, %45, %46 : vector<1x1x128xi1>, vector<1x1x128xf32>
      %48 = arith.addf %41, %47 : vector<1x1x128xf32>
      %c2_i32 = arith.constant 2 : i32
      %49 = vector.broadcast %c2_i32 : i32 to vector<1x1x128xi32>
      %50 = arith.cmpi eq, %35, %49 : vector<1x1x128xi32>
      %51 = vector.shape_cast %34 : vector<1x1xf32> to vector<1x1x1xf32>
      %52 = vector.broadcast %51 : vector<1x1x1xf32> to vector<1x1x128xf32>
      %53 = vector.broadcast %cst_0 : f32 to vector<1x1x128xf32>
      %54 = arith.select %50, %52, %53 : vector<1x1x128xi1>, vector<1x1x128xf32>
      %55 = arith.addf %48, %54 : vector<1x1x128xf32>
      %c0_16 = arith.constant 0 : index
      %c0_17 = arith.constant 0 : index
      %c0_18 = arith.constant 0 : index
      %56 = vector.load %arg4[%c0_16, %c0_17, %c0_18] : memref<1x1x128xf32, #tpu.memory_space<vmem>>, vector<1x1x128xf32>
      tpu.vector_store %arg4[%c0_16, %c0_17, %c0_18], %55 {strides = array<i32>} : memref<1x1x128xf32, #tpu.memory_space<vmem>>, vector<1x1x128xf32>,
    } else {
    }
    %c1_i32_1 = arith.constant 1 : i32
    %3 = arith.cmpi eq, %arg0, %c1_i32_1 : i32
    %4 = arith.extui %3 : i1 to i32
    %cst_2 = arith.constant 0.000000e+00 : f32
    %cst_3 = arith.constant 1.000000e+00 : f32
    %c0_i32_4 = arith.constant 0 : i32
    %5 = arith.cmpi ne, %4, %c0_i32_4 : i32
    scf.if %5 {
      %c8_i32 = arith.constant 8 : i32
      %6 = arith.muli %arg0, %c8_i32 : i32
      %c14_i32 = arith.constant 14 : i32
      %7 = arith.subi %c14_i32, %6 : i32
      %8 = tpu.iota {dimensions = array<i32: 0>} : vector<8x252xi32>
      %9 = vector.broadcast %7 : i32 to vector<8x252xi32>
      %10 = arith.cmpi slt, %8, %9 : vector<8x252xi32>
      %c0 = arith.constant 0 : index
      %c0_5 = arith.constant 0 : index
      %11 = vector.load %arg1[%c0, %c0_5] : memref<8x252xf32, #tpu.memory_space<vmem>>, vector<8x252xf32>
      %c0_6 = arith.constant 0 : index
      %c0_7 = arith.constant 0 : index
      %12 = vector.load %arg2[%c0_6, %c0_7] : memref<8x252xf32, #tpu.memory_space<vmem>>, vector<8x252xf32>
      %c0_8 = arith.constant 0 : index
      %c0_9 = arith.constant 0 : index
      %13 = vector.load %arg3[%c0_8, %c0_9] : memref<1x252xf32, #tpu.memory_space<vmem>>, vector<1x252xf32>
      %14 = vector.broadcast %13 : vector<1x252xf32> to vector<8x252xf32>
      %15 = arith.cmpf ogt, %11, %14 : vector<8x252xf32>
      %cst_10 = arith.constant 1.000000e+00 : f32
      %16 = vector.broadcast %cst_10 : f32 to vector<8x252xf32>
      %17 = arith.cmpf oeq, %12, %16 : vector<8x252xf32>
      %18 = arith.andi %17, %15 : vector<8x252xi1>
      %19 = arith.andi %15, %10 : vector<8x252xi1>
      %20 = arith.andi %18, %10 : vector<8x252xi1>
      %21 = vector.broadcast %cst_2 : f32 to vector<8x252xf32>
      %22 = arith.select %10, %12, %21 : vector<8x252xi1>, vector<8x252xf32>
      %23 = vector.broadcast %cst_3 : f32 to vector<8x252xf32>
      %24 = vector.broadcast %cst_2 : f32 to vector<8x252xf32>
      %25 = arith.select %20, %23, %24 : vector<8x252xi1>, vector<8x252xf32>
      %26 = vector.shape_cast %25 : vector<8x252xf32> to vector<1x8x252xf32>
      %cst_11 = arith.constant dense<0.000000e+00> : vector<1xf32>
      %27 = vector.multi_reduction <add>, %26, %cst_11 [1, 2] : vector<1x8x252xf32> to vector<1xf32>
      %28 = vector.shape_cast %27 : vector<1xf32> to vector<1x1x1xf32>
      %29 = vector.extract %28[0, 0, 0] : f32 from vector<1x1x1xf32>
      %30 = vector.broadcast %29 : f32 to vector<1x1xf32>
      %31 = vector.broadcast %cst_3 : f32 to vector<8x252xf32>
      %32 = vector.broadcast %cst_2 : f32 to vector<8x252xf32>
      %33 = arith.select %19, %31, %32 : vector<8x252xi1>, vector<8x252xf32>
      %34 = vector.shape_cast %33 : vector<8x252xf32> to vector<1x8x252xf32>
      %cst_12 = arith.constant dense<0.000000e+00> : vector<1xf32>
      %35 = vector.multi_reduction <add>, %34, %cst_12 [1, 2] : vector<1x8x252xf32> to vector<1xf32>
      %36 = vector.shape_cast %35 : vector<1xf32> to vector<1x1x1xf32>
      %37 = vector.extract %36[0, 0, 0] : f32 from vector<1x1x1xf32>
      %38 = vector.broadcast %37 : f32 to vector<1x1xf32>
      %39 = vector.shape_cast %22 : vector<8x252xf32> to vector<1x8x252xf32>
      %cst_13 = arith.constant dense<0.000000e+00> : vector<1xf32>
      %40 = vector.multi_reduction <add>, %39, %cst_13 [1, 2] : vector<1x8x252xf32> to vector<1xf32>
      %41 = vector.shape_cast %40 : vector<1xf32> to vector<1x1x1xf32>
      %42 = vector.extract %41[0, 0, 0] : f32 from vector<1x1x1xf32>
      %43 = vector.broadcast %42 : f32 to vector<1x1xf32>
      %44 = tpu.iota {dimensions = array<i32: 2>} : vector<1x1x128xi32>
      %c0_i32_14 = arith.constant 0 : i32
      %45 = vector.broadcast %c0_i32_14 : i32 to vector<1x1x128xi32>
      %46 = arith.cmpi eq, %44, %45 : vector<1x1x128xi32>
      %47 = vector.shape_cast %30 : vector<1x1xf32> to vector<1x1x1xf32>
      %48 = vector.broadcast %47 : vector<1x1x1xf32> to vector<1x1x128xf32>
      %49 = vector.broadcast %cst_2 : f32 to vector<1x1x128xf32>
      %50 = arith.select %46, %48, %49 : vector<1x1x128xi1>, vector<1x1x128xf32>
      %c1_i32_15 = arith.constant 1 : i32
      %51 = vector.broadcast %c1_i32_15 : i32 to vector<1x1x128xi32>
      %52 = arith.cmpi eq, %44, %51 : vector<1x1x128xi32>
      %53 = vector.shape_cast %38 : vector<1x1xf32> to vector<1x1x1xf32>
      %54 = vector.broadcast %53 : vector<1x1x1xf32> to vector<1x1x128xf32>
      %55 = vector.broadcast %cst_2 : f32 to vector<1x1x128xf32>
      %56 = arith.select %52, %54, %55 : vector<1x1x128xi1>, vector<1x1x128xf32>
      %57 = arith.addf %50, %56 : vector<1x1x128xf32>
      %c2_i32 = arith.constant 2 : i32
      %58 = vector.broadcast %c2_i32 : i32 to vector<1x1x128xi32>
      %59 = arith.cmpi eq, %44, %58 : vector<1x1x128xi32>
      %60 = vector.shape_cast %43 : vector<1x1xf32> to vector<1x1x1xf32>
      %61 = vector.broadcast %60 : vector<1x1x1xf32> to vector<1x1x128xf32>
      %62 = vector.broadcast %cst_2 : f32 to vector<1x1x128xf32>
      %63 = arith.select %59, %61, %62 : vector<1x1x128xi1>, vector<1x1x128xf32>
      %64 = arith.addf %57, %63 : vector<1x1x128xf32>
      %c0_16 = arith.constant 0 : index
      %c0_17 = arith.constant 0 : index
      %c0_18 = arith.constant 0 : index
      %65 = vector.load %arg4[%c0_16, %c0_17, %c0_18] : memref<1x1x128xf32, #tpu.memory_space<vmem>>, vector<1x1x128xf32>
      tpu.vector_store %arg4[%c0_16, %c0_17, %c0_18], %64 {strides = array<i32>} : memref<1x1x128xf32, #tpu.memory_space<vmem>>, vector<1x1x128xf32>,
    } else {
    }
    return
  }
  func.func @transform_0(%arg0: i32) -> (i32, i32) {
    %c0_i32 = arith.constant 0 : i32
    %c0_i32_0 = arith.constant 0 : i32
    return %arg0, %c0_i32 : i32, i32
  }
  func.func @transform_1(%arg0: i32) -> (i32, i32) {
    %c0_i32 = arith.constant 0 : i32
    %c0_i32_0 = arith.constant 0 : i32
    return %arg0, %c0_i32 : i32, i32
  }
  func.func @transform_2(%arg0: i32) -> (i32, i32) {
    %c0_i32 = arith.constant 0 : i32
    %c0_i32_0 = arith.constant 0 : i32
    %c0_i32_1 = arith.constant 0 : i32
    return %c0_i32, %c0_i32_0 : i32, i32
  }
  func.func @transform_3(%arg0: i32) -> (i32, i32, i32) {
    %c0_i32 = arith.constant 0 : i32
    %c0_i32_0 = arith.constant 0 : i32
    %c0_i32_1 = arith.constant 0 : i32
    return %arg0, %c0_i32, %c0_i32_0 : i32, i32, i32
  }
}

</mosaic_0001>

<llo_original>
// kernel: tpu_custom_call.1
$region0: #{tpu_custom_call.1}
  #allocation0 [shape = 'u32[]', space=smem, size = 0x4, offset = 0x4, fixed_abs, tag = 'smem constant byte address 0x4 - core index']
  #allocation1 [shape = 'u32[144,128]{1,0:T(1,128)}', space=vmem, size = 0x12000, scoped, tag = 'internal scratch']
  %s0 = inlined_call_operand.hbm [shape: f32[14,252], index: 0, kind: input, shape index: {}]
  %s1 = inlined_call_operand.hbm [shape: f32[14,252], index: 1, kind: input, shape index: {}]
  %s2 = inlined_call_operand.hbm [shape: f32[1,252], index: 2, kind: input, shape index: {}]
  %s3 = inlined_call_operand.hbm [shape: f32[2,1,128], index: 3, kind: output, shape index: {}]
  %s4 = sld [smem:[#allocation0]]
  $region65: #{tpu_custom_call.1} parent=0
    _
  %s6 = ssub.s32 1, %s4
  %s7 = scalar_select 0, %s6, %s4
  $region1: #{tpu_custom_call.1} parent=0
    #allocation2 [shape = 'u8[16384]{0}', space=vmem, size = 0x4000, scoped, tag = 'input window, operand 0']
    #allocation3 [shape = 's32[2]{0}', space=sflag, size = 0x8, scoped, tag = 'scoped memory for tpu_custom_call.1']
    #allocation4 [shape = 's32[2]{0}', space=sflag, size = 0x8, scoped, tag = 'scoped memory for tpu_custom_call.1']
    #allocation5 [shape = 'u8[16384]{0}', space=vmem, size = 0x4000, scoped, tag = 'input window, operand 1']
    #allocation6 [shape = 's32[2]{0}', space=sflag, size = 0x8, scoped, tag = 'scoped memory for tpu_custom_call.1']
    #allocation7 [shape = 'u8[1024]{0}', space=vmem, size = 0x400, scoped, tag = 'input window, operand 2, single buffered']
    #allocation8 [shape = 'u8[1024]{0}', space=vmem, size = 0x400, scoped, tag = 'output window, operand 0']
    %8 = vsyncpa [#allocation3], 0
    %s9 = scalar_lea.sflag [#allocation3], 1
    %10 = vsyncpa %s9, 0
    %11 = vsyncpa [#allocation6], 0
    %s12 = scalar_lea.sflag [#allocation6], 1
    %13 = vsyncpa %s12, 0
    %14 = vsyncpa [#allocation4], 0
    %s15 = scalar_lea.sflag [#allocation4], 1
    %16 = vsyncpa %s15, 0
    loop: start=0, step=1, limit=4
    $region2: #{tpu_custom_call.1} parent=1 // loop_pre_header
      _
    $region3: #{tpu_custom_call.1} parent=1 // loop_header
      %s18 = sphi 0, %s22
      %p19 = scmp.ge.s32.totalorder %s18, 4
      %s28 = sphi 0, %s30
      %s31 = sphi 0, %s28
      %s32 = sphi 0, %s31
      %s48 = sphi 0, %s32
      %s54 = sphi 0, %s56
      %s57 = sphi 0, %s54
      %s58 = sphi 0, %s57
      %s74 = sphi 0, %s58
      %s78 = sphi 0, %s78
      %s80 = sphi 0, %s78
      %s81 = sphi 0, %s80
      %s95 = sphi 0, %s81
      %s101 = sphi 0, %s103
      %s104 = sphi 0, %s101
      %s105 = sphi 0, %s104
      %s121 = sphi 0, %s105
    $region4: #{tpu_custom_call.1} parent=1 // loop_header_branch
      %21 = sbr.rel (%p19) target = $region8
    $region5: #{tpu_custom_call.1} parent=1 // loop_body
      %s23 = ssub.s32 %s18, 1
      %s24 = ssub.s32 %s18, 2
      %s25 = sadd.s32 %s18, 1
      %s26 = ssub.s32 %s18, %s25
      %p27 = scmp.eq.s32.totalorder %s26, 0
      %s29 = sadd.s32 %s28, 1
      %s30 = scalar_select %p27, %s28, %s29
      %p33 = pneg %p27
      %p34 = scmp.eq.s32.totalorder %s18, 1
      %p35 = por %p33, %p34
      %p36 = scmp.ne.s32.totalorder %s28, %s31
      %p37 = scmp.eq.s32.totalorder %s18, 0
      %p38 = por %p36, %p37
      %p39 = scmp.ne.s32.totalorder %s28, %s31
      %p40 = scmp.eq.s32.totalorder %s23, 1
      %p41 = por %p39, %p40
      %p42 = scmp.ne.s32.totalorder %s31, %s32
      %p43 = scmp.eq.s32.totalorder %s23, 0
      %p44 = por %p42, %p43
      %p45 = scmp.ne.s32.totalorder %s31, %s32
      %p46 = scmp.eq.s32.totalorder %s24, 1
      %p47 = por %p45, %p46
      %p49 = scmp.ne.s32.totalorder %s32, %s48
      %p50 = scmp.eq.s32.totalorder %s24, 0
      %p51 = por %p49, %p50
      %s52 = ssub.s32 %s18, %s25
      %p53 = scmp.eq.s32.totalorder %s52, 0
      %s55 = sadd.s32 %s54, 1
      %s56 = scalar_select %p53, %s54, %s55
      %p59 = pneg %p53
      %p60 = scmp.eq.s32.totalorder %s18, 1
      %p61 = por %p59, %p60
      %p62 = scmp.ne.s32.totalorder %s54, %s57
      %p63 = scmp.eq.s32.totalorder %s18, 0
      %p64 = por %p62, %p63
      %p65 = scmp.ne.s32.totalorder %s54, %s57
      %p66 = scmp.eq.s32.totalorder %s23, 1
      %p67 = por %p65, %p66
      %p68 = scmp.ne.s32.totalorder %s57, %s58
      %p69 = scmp.eq.s32.totalorder %s23, 0
      %p70 = por %p68, %p69
      %p71 = scmp.ne.s32.totalorder %s57, %s58
      %p72 = scmp.eq.s32.totalorder %s24, 1
      %p73 = por %p71, %p72
      %p75 = scmp.ne.s32.totalorder %s58, %s74
      %p76 = scmp.eq.s32.totalorder %s24, 0
      %p77 = por %p75, %p76
      %s79 = sadd.s32 %s78, 1
      %p82 = scmp.eq.s32.totalorder %s18, 1
      %p83 = scmp.ne.s32.totalorder %s78, %s80
      %p84 = scmp.eq.s32.totalorder %s18, 0
      %p85 = por %p83, %p84
      %p86 = scmp.ne.s32.totalorder %s78, %s80
      %p87 = scmp.eq.s32.totalorder %s23, 1
      %p88 = por %p86, %p87
      %p89 = scmp.ne.s32.totalorder %s80, %s81
      %p90 = scmp.eq.s32.totalorder %s23, 0
      %p91 = por %p89, %p90
      %p92 = scmp.ne.s32.totalorder %s80, %s81
      %p93 = scmp.eq.s32.totalorder %s24, 1
      %p94 = por %p92, %p93
      %p96 = scmp.ne.s32.totalorder %s81, %s95
      %p97 = scmp.eq.s32.totalorder %s24, 0
      %p98 = por %p96, %p97
      %s99 = ssub.s32 %s18, %s25
      %p100 = scmp.eq.s32.totalorder %s99, 0
      %s102 = sadd.s32 %s101, 1
      %s103 = scalar_select %p100, %s101, %s102
      %p106 = pneg %p100
      %p107 = scmp.eq.s32.totalorder %s18, 1
      %p108 = por %p106, %p107
      %p109 = scmp.ne.s32.totalorder %s101, %s104
      %p110 = scmp.eq.s32.totalorder %s18, 0
      %p111 = por %p109, %p110
      %p112 = scmp.ne.s32.totalorder %s101, %s104
      %p113 = scmp.eq.s32.totalorder %s23, 1
      %p114 = por %p112, %p113
      %p115 = scmp.ne.s32.totalorder %s104, %s105
      %p116 = scmp.eq.s32.totalorder %s23, 0
      %p117 = por %p115, %p116
      %p118 = scmp.ne.s32.totalorder %s104, %s105
      %p119 = scmp.eq.s32.totalorder %s24, 1
      %p120 = por %p118, %p119
      %p122 = scmp.ne.s32.totalorder %s105, %s121
      %p123 = scmp.eq.s32.totalorder %s24, 0
      %p124 = por %p122, %p123
      %p125 = scmp.le.s32.totalorder 1, %s18
      %p126 = scmp.lt.s32.totalorder %s18, 3
      %p127 = pnand %p125, %p126
      %p128 = pneg %p127
      // Predicated region
      $region9: #{tpu_custom_call.1} parent=5 // pred_check
        _
      $region10: #{tpu_custom_call.1} parent=5 // pred_check_branch
        %130 = sbr.rel (%p127) target = $region12
      $region11: #{tpu_custom_call.1} parent=5 // pred_region
        %s131 = ssub.s32 %s18, 1
        // Predicated region
        $region13: #{tpu_custom_call.1} parent=11 // pred_check
          %p132 = pneg %p91
        $region14: #{tpu_custom_call.1} parent=11 // pred_check_branch
          %134 = sbr.rel (%p132) target = $region16
        $region15: #{tpu_custom_call.1} parent=11 // pred_region
          %s136 = ssub.s32 32, 32
          %137 = vsyncadd [#allocation6], %s136
          %s139 = sshll.u32 [#allocation7], 4
          %s140 = int_to_ptr.vmem [resolvable:$true] %s139
          %142 = dma.hbm_to_vmem [thread:$0]  %s2, 32, %s140, [#allocation6]
        $region16: #{tpu_custom_call.1} parent=11 // pred_fallthru
          _
      $region12: #{tpu_custom_call.1} parent=5 // pred_fallthru
        _
      %p143 = scmp.lt.s32.totalorder %s18, 2
      // Predicated region
      $region17: #{tpu_custom_call.1} parent=5 // pred_check
        %p144 = pneg %p143
      $region18: #{tpu_custom_call.1} parent=5 // pred_check_branch
        %146 = sbr.rel (%p144) target = $region20
      $region19: #{tpu_custom_call.1} parent=5 // pred_region
        // Predicated region
        $region21: #{tpu_custom_call.1} parent=19 // pred_check
          %p147 = pneg %p38
        $region22: #{tpu_custom_call.1} parent=19 // pred_check_branch
          %149 = sbr.rel (%p147) target = $region24
        $region23: #{tpu_custom_call.1} parent=19 // pred_region
          %s150 = sand.u32 %s28, 1
          %s151 = scalar_lea.sflag [#allocation3], %s150
          %s152 = sand.u32 %s28, 1
          %s153 = smul.addr %s152, 16
          %s154 = scalar_lea.vmem [#allocation2], %s153
          %s156 = ssub.s32 256, 256
          %157 = vsyncadd %s151, %s156
          %s158 = smul.addr %s18, 2
          %s159 = smul.addr %s158, 128
          %s160 = scalar_lea.hbm %s0, %s159
          %s162 = sshll.u32 %s154, 4
          %s163 = int_to_ptr.vmem [resolvable:$true] %s162
          %165 = dma.hbm_to_vmem [thread:$0]  %s160, 256, %s163, %s151
        $region24: #{tpu_custom_call.1} parent=19 // pred_fallthru
          _
        // Predicated region
        $region25: #{tpu_custom_call.1} parent=19 // pred_check
          %p166 = pneg %p64
        $region26: #{tpu_custom_call.1} parent=19 // pred_check_branch
          %168 = sbr.rel (%p166) target = $region28
        $region27: #{tpu_custom_call.1} parent=19 // pred_region
          %s169 = sand.u32 %s18, 1
          %s170 = scalar_lea.sflag [#allocation6], %s169
          %s171 = sand.u32 %s54, 1
          %s172 = smul.addr %s171, 16
          %s173 = scalar_lea.vmem [#allocation5], %s172
          %s175 = ssub.s32 256, 256
          %176 = vsyncadd %s170, %s175
          %s177 = smul.addr %s18, 2
          %s178 = smul.addr %s177, 128
          %s179 = scalar_lea.hbm %s1, %s178
          %s181 = sshll.u32 %s173, 4
          %s182 = int_to_ptr.vmem [resolvable:$true] %s181
          %184 = dma.hbm_to_vmem [thread:$0]  %s179, 256, %s182, %s170
        $region28: #{tpu_custom_call.1} parent=19 // pred_fallthru
          _
      $region20: #{tpu_custom_call.1} parent=5 // pred_fallthru
        _
      %p185 = scmp.le.s32.totalorder 1, %s18
      %p186 = scmp.lt.s32.totalorder %s18, 3
      %p187 = pnand %p185, %p186
      %p188 = pneg %p187
      // Predicated region
      $region29: #{tpu_custom_call.1} parent=5 // pred_check
        _
      $region30: #{tpu_custom_call.1} parent=5 // pred_check_branch
        %190 = sbr.rel (%p187) target = $region32
      $region31: #{tpu_custom_call.1} parent=5 // pred_region
        %s191 = ssub.s32 %s18, 1
        %s192 = sand.u32 %s31, 1
        %s193 = scalar_lea.sflag [#allocation3], %s192
        %s194 = sand.u32 %s31, 1
        %s195 = smul.addr %s194, 16
        %s196 = scalar_lea.vmem [#allocation2], %s195
        // Predicated region
        $region33: #{tpu_custom_call.1} parent=31 // pred_check
          %p197 = pneg %p44
        $region34: #{tpu_custom_call.1} parent=31 // pred_check_branch
          %199 = sbr.rel (%p197) target = $region36
        $region35: #{tpu_custom_call.1} parent=31 // pred_region
          %200 = dma.done %s193, 256
        $region36: #{tpu_custom_call.1} parent=31 // pred_fallthru
          _
        %s201 = sand.u32 %s23, 1
        %s202 = scalar_lea.sflag [#allocation6], %s201
        %s203 = sand.u32 %s57, 1
        %s204 = smul.addr %s203, 16
        %s205 = scalar_lea.vmem [#allocation5], %s204
        // Predicated region
        $region37: #{tpu_custom_call.1} parent=31 // pred_check
          %p206 = pneg %p70
        $region38: #{tpu_custom_call.1} parent=31 // pred_check_branch
          %208 = sbr.rel (%p206) target = $region40
        $region39: #{tpu_custom_call.1} parent=31 // pred_region
          %209 = dma.done %s202, 256
        $region40: #{tpu_custom_call.1} parent=31 // pred_fallthru
          _
        // Predicated region
        $region41: #{tpu_custom_call.1} parent=31 // pred_check
          %p210 = pneg %p91
        $region42: #{tpu_custom_call.1} parent=31 // pred_check_branch
          %212 = sbr.rel (%p210) target = $region44
        $region43: #{tpu_custom_call.1} parent=31 // pred_region
          %213 = dma.done [#allocation6], 32
        $region44: #{tpu_custom_call.1} parent=31 // pred_fallthru
          _
        %s214 = sand.u32 %s31, 1
        %s215 = scalar_lea.sflag [#allocation3], %s214
        %s216 = sand.u32 %s31, 1
        %s217 = smul.addr %s216, 16
        %s218 = scalar_lea.vmem [#allocation2], %s217
        %p219 = pneg %p44
        %p220 = pneg %p41
        %s221 = sand.u32 %s23, 1
        %s222 = scalar_lea.sflag [#allocation6], %s221
        %s223 = sand.u32 %s57, 1
        %s224 = smul.addr %s223, 16
        %s225 = scalar_lea.vmem [#allocation5], %s224
        %p226 = pneg %p70
        %p227 = pneg %p67
        %p228 = pneg %p91
        %p229 = pneg %p88
        %p230 = pneg %p117
        %p231 = pneg %p114
        %s232 = sand.u32 %s104, 1
        %s233 = scalar_lea.sflag [#allocation4], %s232
        %s234 = sand.u32 %s104, 1
        %s235 = scalar_lea.vmem [#allocation8], %s234
        %p236 = scmp.ne.s32.totalorder %s23, 1
        // Predicated region
        $region45: #{tpu_custom_call.1} parent=31 // pred_check
          %p237 = pneg %p236
        $region46: #{tpu_custom_call.1} parent=31 // pred_check_branch
          %239 = sbr.rel (%p237) target = $region48
        $region47: #{tpu_custom_call.1} parent=31 // pred_region
          %v240 = vld [vmem:[%s196] sm:$0xff]
          %v241 = vld [vmem:[%s196 + $0x8] sm:$0xff]
          %v242 = vld [vmem:[%s205] sm:$0xff]
          %v243 = vld [vmem:[%s205 + $0x8] sm:$0xff]
          %v244 = vld [vmem:[#allocation7] sm:$0x3]
          %v246 = vlaneseq
          %v247 = vshrl.u32 %v246, 7
          %v248 = vsub.s32 0, %v247
          %v249 = vrot.slane %v244, %v248
          %v250 = vlaneseq
          %v251 = vshrl.u32 %v250, 7
          %v252 = vsub.s32 1, %v251
          %v253 = vrot.slane %v244, %v252
          %vm256 = vcmp.gt.f32.partialorder %v240, %v249
          %vm257 = vcmp.gt.f32.partialorder %v241, %v253
          %vm258 = vcmp.eq.f32.partialorder %v242, 1.0
          %vm259 = vcmp.eq.f32.partialorder %v243, 1.0
          %vm260 = vmand %vm258, %vm256
          %vm261 = vmand %vm259, %vm257
          %v262 = vsel %vm260, 1.0, 0.0
          %v263 = vsel %vm261, 1.0, 0.0
          %vm264 = vcmask 1014784
          %v265 = vsel %vm264, %v263, 0.0
          %v266 = vadd.f32 %v262, %v265
          %267 = vadd.xlane.f32.xlu0 %v266
          %v268 = vpop.xlane.xlu0 %267
          %v269 = vrot.slane %v268, 4
          %v270 = vadd.f32 %v268, %v269
          %v271 = vrot.slane %v270, 2
          %v272 = vadd.f32 %v270, %v271
          %v273 = vrot.slane %v272, 1
          %v274 = vadd.f32 %v272, %v273
          %s275 = vtos %v274
          %v276 = vsel %vm256, 1.0, 0.0
          %v277 = vsel %vm257, 1.0, 0.0
          %v278 = vsel %vm264, %v277, 0.0
          %v279 = vadd.f32 %v276, %v278
          %280 = vadd.xlane.f32.xlu0 %v279
          %v281 = vpop.xlane.xlu0 %280
          %v282 = vrot.slane %v281, 4
          %v283 = vadd.f32 %v281, %v282
          %v284 = vrot.slane %v283, 2
          %v285 = vadd.f32 %v283, %v284
          %v286 = vrot.slane %v285, 1
          %v287 = vadd.f32 %v285, %v286
          %s288 = vtos %v287
          %v289 = vsel %vm264, %v243, 0.0
          %v290 = vadd.f32 %v242, %v289
          %291 = vadd.xlane.f32.xlu0 %v290
          %v292 = vpop.xlane.xlu0 %291
          %v293 = vrot.slane %v292, 4
          %v294 = vadd.f32 %v292, %v293
          %v295 = vrot.slane %v294, 2
          %v296 = vadd.f32 %v294, %v295
          %v297 = vrot.slane %v296, 1
          %v298 = vadd.f32 %v296, %v297
          %s299 = vtos %v298
          %v300 = vlaneseq
          %v301 = vand.u32 %v300, 127
          %vm302 = vcmp.eq.s32.totalorder %v301, 0
          %v303 = vstv %s275
          %v304 = vsel %vm302, %v303, 0.0
          %vm305 = vcmp.eq.s32.totalorder %v301, 1
          %v306 = vstv %s288
          %v307 = vsel %vm305, %v306, 0.0
          %v308 = vadd.f32 %v304, %v307
          %vm309 = vcmp.eq.s32.totalorder %v301, 2
          %v310 = vstv %s299
          %v311 = vsel %vm309, %v310, 0.0
          %v312 = vadd.f32 %v308, %v311
          %313 = vst [vmem:[%s235] sm:$0x1] %v312
        $region48: #{tpu_custom_call.1} parent=31 // pred_fallthru
          _
        %p314 = scmp.eq.s32.totalorder %s23, 1
        // Predicated region
        $region49: #{tpu_custom_call.1} parent=31 // pred_check
          %p315 = pneg %p314
        $region50: #{tpu_custom_call.1} parent=31 // pred_check_branch
          %317 = sbr.rel (%p315) target = $region52
        $region51: #{tpu_custom_call.1} parent=31 // pred_region
          %s318 = smul.u32 %s23, 8
          %s319 = ssub.s32 14, %s318
          %v320 = vlaneseq
          %v321 = vshrl.u32 %v320, 7
          %v322 = vstv %s319
          %vm323 = vcmp.lt.s32.totalorder %v321, %v322
          %v324 = vld [vmem:[%s196] sm:$0xff]
          %v325 = vld [vmem:[%s196 + $0x8] sm:$0xff]
          %v326 = vld [vmem:[%s205] sm:$0xff]
          %v327 = vld [vmem:[%s205 + $0x8] sm:$0xff]
          %v328 = vld [vmem:[#allocation7] sm:$0x3]
          %v330 = vlaneseq
          %v331 = vshrl.u32 %v330, 7
          %v332 = vsub.s32 0, %v331
          %v333 = vrot.slane %v328, %v332
          %v334 = vlaneseq
          %v335 = vshrl.u32 %v334, 7
          %v336 = vsub.s32 1, %v335
          %v337 = vrot.slane %v328, %v336
          %vm340 = vcmp.gt.f32.partialorder %v324, %v333
          %vm341 = vcmp.gt.f32.partialorder %v325, %v337
          %vm342 = vcmp.eq.f32.partialorder %v326, 1.0
          %vm343 = vcmp.eq.f32.partialorder %v327, 1.0
          %vm344 = vmand %vm342, %vm340
          %vm345 = vmand %vm343, %vm341
          %vm346 = vmand %vm340, %vm323
          %vm347 = vmand %vm341, %vm323
          %vm348 = vmand %vm344, %vm323
          %vm349 = vmand %vm345, %vm323
          %v350 = vsel %vm323, %v326, 0.0
          %v351 = vsel %vm323, %v327, 0.0
          %v352 = vsel %vm348, 1.0, 0.0
          %v353 = vsel %vm349, 1.0, 0.0
          %vm354 = vcmask 1014784
          %v355 = vsel %vm354, %v353, 0.0
          %v356 = vadd.f32 %v352, %v355
          %357 = vadd.xlane.f32.xlu0 %v356
          %v358 = vpop.xlane.xlu0 %357
          %v359 = vrot.slane %v358, 4
          %v360 = vadd.f32 %v358, %v359
          %v361 = vrot.slane %v360, 2
          %v362 = vadd.f32 %v360, %v361
          %v363 = vrot.slane %v362, 1
          %v364 = vadd.f32 %v362, %v363
          %s365 = vtos %v364
          %v366 = vsel %vm346, 1.0, 0.0
          %v367 = vsel %vm347, 1.0, 0.0
          %v368 = vsel %vm354, %v367, 0.0
          %v369 = vadd.f32 %v366, %v368
          %370 = vadd.xlane.f32.xlu0 %v369
          %v371 = vpop.xlane.xlu0 %370
          %v372 = vrot.slane %v371, 4
          %v373 = vadd.f32 %v371, %v372
          %v374 = vrot.slane %v373, 2
          %v375 = vadd.f32 %v373, %v374
          %v376 = vrot.slane %v375, 1
          %v377 = vadd.f32 %v375, %v376
          %s378 = vtos %v377
          %v379 = vsel %vm354, %v351, 0.0
          %v380 = vadd.f32 %v350, %v379
          %381 = vadd.xlane.f32.xlu0 %v380
          %v382 = vpop.xlane.xlu0 %381
          %v383 = vrot.slane %v382, 4
          %v384 = vadd.f32 %v382, %v383
          %v385 = vrot.slane %v384, 2
          %v386 = vadd.f32 %v384, %v385
          %v387 = vrot.slane %v386, 1
          %v388 = vadd.f32 %v386, %v387
          %s389 = vtos %v388
          %v390 = vlaneseq
          %v391 = vand.u32 %v390, 127
          %vm392 = vcmp.eq.s32.totalorder %v391, 0
          %v393 = vstv %s365
          %v394 = vsel %vm392, %v393, 0.0
          %vm395 = vcmp.eq.s32.totalorder %v391, 1
          %v396 = vstv %s378
          %v397 = vsel %vm395, %v396, 0.0
          %v398 = vadd.f32 %v394, %v397
          %vm399 = vcmp.eq.s32.totalorder %v391, 2
          %v400 = vstv %s389
          %v401 = vsel %vm399, %v400, 0.0
          %v402 = vadd.f32 %v398, %v401
          %403 = vst [vmem:[%s235] sm:$0x1] %v402
        $region52: #{tpu_custom_call.1} parent=31 // pred_fallthru
          _
        %s404 = sand.u32 %s104, 1
        %s405 = scalar_lea.sflag [#allocation4], %s404
        %s406 = sand.u32 %s104, 1
        %s407 = scalar_lea.vmem [#allocation8], %s406
        // Predicated region
        $region53: #{tpu_custom_call.1} parent=31 // pred_check
          %p408 = pneg %p114
        $region54: #{tpu_custom_call.1} parent=31 // pred_check_branch
          %410 = sbr.rel (%p408) target = $region56
        $region55: #{tpu_custom_call.1} parent=31 // pred_region
          %s412 = ssub.s32 16, 16
          %413 = vsyncadd %s405, %s412
          %s414 = smul.addr %s23, 16
          %s415 = scalar_lea.hbm %s3, %s414
          %s417 = sshll.u32 %s407, 4
          %s418 = int_to_ptr.vmem [resolvable:$true] %s417
          %420 = dma.vmem_to_hbm [thread:$0]  %s418, 16, %s415, %s405
        $region56: #{tpu_custom_call.1} parent=31 // pred_fallthru
          _
      $region32: #{tpu_custom_call.1} parent=5 // pred_fallthru
        _
      %p421 = scmp.le.s32.totalorder 2, %s18
      // Predicated region
      $region57: #{tpu_custom_call.1} parent=5 // pred_check
        %p422 = pneg %p421
      $region58: #{tpu_custom_call.1} parent=5 // pred_check_branch
        %424 = sbr.rel (%p422) target = $region60
      $region59: #{tpu_custom_call.1} parent=5 // pred_region
        %s425 = ssub.s32 %s18, 2
        // Predicated region
        $region61: #{tpu_custom_call.1} parent=59 // pred_check
          %p426 = pneg %p120
        $region62: #{tpu_custom_call.1} parent=59 // pred_check_branch
          %428 = sbr.rel (%p426) target = $region64
        $region63: #{tpu_custom_call.1} parent=59 // pred_region
          %s429 = sand.u32 %s105, 1
          %s430 = scalar_lea.sflag [#allocation4], %s429
          %s431 = sand.u32 %s105, 1
          %s432 = scalar_lea.vmem [#allocation8], %s431
          %433 = dma.done %s430, 16
        $region64: #{tpu_custom_call.1} parent=59 // pred_fallthru
          _
      $region60: #{tpu_custom_call.1} parent=5 // pred_fallthru
        _
    $region6: #{tpu_custom_call.1} parent=1 // loop_footer
      %s22 = sadd.s32 1, %s18
    $region7: #{tpu_custom_call.1} parent=1 // loop_footer_branch
      %17 = sbr.rel target = $region3
    $region8: #{tpu_custom_call.1} parent=1 // loop_exit
      _
    %434 = vsyncpa [#allocation3], 1
    %s435 = scalar_lea.sflag [#allocation3], 1
    %436 = vsyncpa %s435, 1
    %437 = vsyncpa [#allocation6], 1
    %s438 = scalar_lea.sflag [#allocation6], 1
    %439 = vsyncpa %s438, 1
    %440 = vsyncpa [#allocation4], 1
    %s441 = scalar_lea.sflag [#allocation4], 1
    %442 = vsyncpa %s441, 1

</llo_original>
